<compile_context>
chip_gen: v5e
topology: v5e:2x2
jax: 0.10.0
libtpu: 0.0.40
codegen_flags: <defaults>
</compile_context>

<pallas_src>
import jax
import jax.numpy as jnp
from jax.experimental import pallas as pl
from jax.experimental.pallas import tpu as pltpu


def relu_conv1x1_kernel(w_ref, x_ref, o_ref):
    # w_ref: (Cin, Cout) bf16 | x_ref: (HW, Cin) f32 | o_ref: (HW, Cout) f32
    x = jnp.maximum(x_ref[...], 0.0)                  # ReLU in f32 (VPU)
    w = w_ref[...].astype(jnp.float32)                # bf16 -> f32 (cheap VPU cast)
    o_ref[...] = jnp.dot(x, w, preferred_element_type=jnp.float32)   # MXU, f32 acc


def prepare_weight(w_oihw):
    """One-time weight prep, outside the per-call hot path:
    (Cout, Cin, 1, 1) f32 -> contiguous (Cin, Cout) bf16 (halves the weight DMA)."""
    cout, cin = w_oihw.shape[0], w_oihw.shape[1]
    return jnp.transpose(w_oihw.reshape(cout, cin), (1, 0)).astype(jnp.bfloat16)


def relu_conv1x1_nhwc(x_nhwc, w_cin_cout):
    """Channels-last core: x (N, H, W, Cin) f32, weight (Cin, Cout) bf16.
    Returns (N, H, W, Cout) f32.  No layout converts -- call this directly when
    the surrounding model runs channels-last."""
    n, h, wdim, cin = x_nhwc.shape
    cout = w_cin_cout.shape[1]
    hw = h * wdim

    x3d = x_nhwc.reshape(n, hw, cin)          # contiguous reshape, no transpose

    cost = pl.CostEstimate(
        flops=2 * n * hw * cin * cout,
        transcendentals=0,
        bytes_accessed=x3d.size * 4 + w_cin_cout.size * 2 + n * hw * cout * 4,
    )

    out3d = pl.pallas_call(
        relu_conv1x1_kernel,
        out_shape=jax.ShapeDtypeStruct((n, hw, cout), jnp.float32),
        grid_spec=pltpu.PrefetchScalarGridSpec(
            num_scalar_prefetch=0,
            grid=(n,),  # weight block index constant -> DMA'd once, stays resident
            in_specs=[
                pl.BlockSpec((cin, cout), lambda b: (0, 0)),         # weight (bf16)
                pl.BlockSpec((None, hw, cin), lambda b: (b, 0, 0)),  # activations (f32)
            ],
            out_specs=pl.BlockSpec((None, hw, cout), lambda b: (b, 0, 0)),
        ),
        compiler_params=pltpu.CompilerParams(
            dimension_semantics=("parallel",)),  # batch axis: megacore-shardable (v7x)
        cost_estimate=cost,
    )(w_cin_cout, x3d)

    return out3d.reshape(n, h, wdim, cout)


def relu_conv1x1_nchw(x_nchw, w_cin_cout):
    """Module-compatible wrapper (PyTorch NCHW in / NCHW out).
    The NCHW<->NHWC converts below exist only for drop-in layout compatibility
    with the original module; a channels-last model absorbs them."""
    out_nhwc = relu_conv1x1_nhwc(jnp.transpose(x_nchw, (0, 2, 3, 1)), w_cin_cout)
    return jnp.transpose(out_nhwc, (0, 3, 1, 2))


if __name__ == "__main__":
    key = jax.random.PRNGKey(0)
    kx, kw = jax.random.split(key)

    # Shapes implied by the module: input (1, 1760, 7, 7), Conv2d(1760 -> 128, 1x1, no bias)
    N, CIN, H, W = 1, 1760, 7, 7
    COUT = 128

    x = jax.random.normal(kx, (N, CIN, H, W), dtype=jnp.float32)
    weight = jax.random.normal(kw, (COUT, CIN, 1, 1), dtype=jnp.float32) * 0.02

    w2d = prepare_weight(weight)          # one-time prep, outside the per-call path
    out = relu_conv1x1_nchw(x, w2d)
    out = jax.block_until_ready(out)

    # Reference: plain-JAX f32 conv with the same semantics as the PyTorch module.
    ref = jax.lax.conv_general_dilated(
        jnp.maximum(x, 0.0), weight,
        window_strides=(1, 1), padding="VALID",
        dimension_numbers=("NCHW", "OIHW", "NCHW"))

    assert out.shape == (N, COUT, H, W)
    # Only the weight is bf16-quantized (f32 activations, f32 accumulation) ->
    # tight tolerance vs the f32 reference.
    assert jnp.allclose(out, ref, atol=1e-2, rtol=1e-2), float(jnp.max(jnp.abs(out - ref)))

    print("KERNEL_OK")
</pallas_src>

<mosaic_0001>
module attributes {stable_mosaic.version = 11 : i64} {
  func.func @relu_conv1x1_kernel(%arg0: i32, %arg1: memref<1760x128xbf16, #tpu.memory_space<vmem>>, %arg2: memref<1x49x1760xf32, #tpu.memory_space<vmem>>, %arg3: memref<1x49x128xf32, #tpu.memory_space<vmem>>) attributes {dimension_semantics = [#tpu.dimension_semantics<parallel>], iteration_bounds = array<i64: 1>, scalar_prefetch = 0 : i64, scratch_operands = 0 : i64, tpu.core_type = #tpu.core_type<tc>, window_params = [{pipeline_mode = #tpu.pipeline_mode<synchronous>, transform_indices = @transform_0, window_bounds = array<i64: 1760, 128>}, {transform_indices = @transform_1, window_bounds = array<i64: 1, 49, 1760>}, {transform_indices = @transform_2, window_bounds = array<i64: 1, 49, 128>}]} {
    %c0 = arith.constant 0 : index
    %c0_0 = arith.constant 0 : index
    %c0_1 = arith.constant 0 : index
    %0 = vector.load %arg2[%c0, %c0_0, %c0_1] : memref<1x49x1760xf32, #tpu.memory_space<vmem>>, vector<1x49x1760xf32>
    %1 = vector.shape_cast %0 : vector<1x49x1760xf32> to vector<49x1760xf32>
    %cst = arith.constant 0.000000e+00 : f32
    %2 = vector.broadcast %cst : f32 to vector<49x1760xf32>
    %3 = arith.maximumf %1, %2 : vector<49x1760xf32>
    %c0_2 = arith.constant 0 : index
    %c0_3 = arith.constant 0 : index
    %4 = vector.load %arg1[%c0_2, %c0_3] : memref<1760x128xbf16, #tpu.memory_space<vmem>>, vector<1760x128xbf16>
    %5 = arith.extf %4 : vector<1760x128xbf16> to vector<1760x128xf32>
    %cst_4 = arith.constant dense<0.000000e+00> : vector<49x128xf32>
    %6 = tpu.matmul %3, %5, %cst_4 {dimension_numbers = #tpu.dot_dimension_numbers<[1], [0], [0], [1], [0, 0, 1, 1], [], []>} : vector<49x1760xf32>, vector<1760x128xf32>, vector<49x128xf32> -> vector<49x128xf32>
    %c0_5 = arith.constant 0 : index
    %c0_6 = arith.constant 0 : index
    %c0_7 = arith.constant 0 : index
    %7 = vector.load %arg3[%c0_5, %c0_6, %c0_7] : memref<1x49x128xf32, #tpu.memory_space<vmem>>, vector<1x49x128xf32>
    %8 = vector.shape_cast %7 : vector<1x49x128xf32> to vector<49x128xf32>
    %9 = vector.shape_cast %6 : vector<49x128xf32> to vector<1x49x128xf32>
    tpu.vector_store %arg3[%c0_5, %c0_6, %c0_7], %9 {strides = array<i32>} : memref<1x49x128xf32, #tpu.memory_space<vmem>>, vector<1x49x128xf32>,
    return
  }
  func.func @transform_0(%arg0: i32) -> (i32, i32) {
    %c0_i32 = arith.constant 0 : i32
    %c0_i32_0 = arith.constant 0 : i32
    %c0_i32_1 = arith.constant 0 : i32
    return %c0_i32, %c0_i32_0 : i32, i32
  }
  func.func @transform_1(%arg0: i32) -> (i32, i32, i32) {
    %c0_i32 = arith.constant 0 : i32
    %c0_i32_0 = arith.constant 0 : i32
    %c0_i32_1 = arith.constant 0 : i32
    return %arg0, %c0_i32, %c0_i32_0 : i32, i32, i32
  }
  func.func @transform_2(%arg0: i32) -> (i32, i32, i32) {
    %c0_i32 = arith.constant 0 : i32
    %c0_i32_0 = arith.constant 0 : i32
    %c0_i32_1 = arith.constant 0 : i32
    return %arg0, %c0_i32, %c0_i32_0 : i32, i32, i32
  }
}

</mosaic_0001>

<llo_original>
// kernel: tpu_custom_call.1
$region0: #{tpu_custom_call.1}
  #allocation0 [shape = 'u32[]', space=smem, size = 0x4, offset = 0x4, fixed_abs, tag = 'smem constant byte address 0x4 - core index']
  #allocation1 [shape = 'u32[72,128]{1,0:T(1,128)}', space=vmem, size = 0x9000, scoped, tag = 'internal scratch']
  %s0 = inlined_call_operand.vmem [shape: bf16[1760,128], index: 0, kind: input, shape index: {}]
  %s1 = inlined_call_operand.vmem [shape: f32[1,49,1760], index: 1, kind: input, shape index: {}]
  %s2 = inlined_call_operand.vmem [shape: f32[1,49,128], index: 2, kind: output, shape index: {}]
  %s3 = sld [smem:[#allocation0]]
  $region18: #{tpu_custom_call.1} parent=0
    _
  %s5 = ssub.s32 1, %s3
  %s6 = scalar_select 0, %s5, %s3
  // Predicated region
  $region2: #{tpu_custom_call.1} parent=0 // pred_check
    _
  $region3: #{tpu_custom_call.1} parent=0 // pred_check_branch
    %8 = sbr.rel (0) target = $region5
  $region4: #{tpu_custom_call.1} parent=0 // pred_region
    _
  $region5: #{tpu_custom_call.1} parent=0 // pred_fallthru
    _
  // Predicated region
  $region6: #{tpu_custom_call.1} parent=0 // pred_check
    _
  $region7: #{tpu_custom_call.1} parent=0 // pred_check_branch
    %10 = sbr.rel (0) target = $region9
  $region8: #{tpu_custom_call.1} parent=0 // pred_region
    _
  $region9: #{tpu_custom_call.1} parent=0 // pred_fallthru
    _
  %v11 = vld [vmem:[%s1] sm:$0xff]
  %v12 = vld [vmem:[%s1 + $0x8] sm:$0xff]
  %v13 = vld [vmem:[%s1 + $0x10] sm:$0xff]
  %v14 = vld [vmem:[%s1 + $0x18] sm:$0xff]
  %v15 = vld [vmem:[%s1 + $0x20] sm:$0xff]
  %v16 = vld [vmem:[%s1 + $0x28] sm:$0xff]
  %v17 = vld [vmem:[%s1 + $0x30] sm:$0xff]
  %v18 = vld [vmem:[%s1 + $0x38] sm:$0xff]
  %v19 = vld [vmem:[%s1 + $0x40] sm:$0xff]
  %v20 = vld [vmem:[%s1 + $0x48] sm:$0xff]
  %v21 = vld [vmem:[%s1 + $0x50] sm:$0xff]
  %v22 = vld [vmem:[%s1 + $0x58] sm:$0xff]
  %v23 = vld [vmem:[%s1 + $0x60] sm:$0xff]
  %v24 = vld [vmem:[%s1 + $0x68] sm:$0xff]
  %v25 = vld [vmem:[%s1 + $0x70] sm:$0xff]
  %v26 = vld [vmem:[%s1 + $0x78] sm:$0xff]
  %v27 = vld [vmem:[%s1 + $0x80] sm:$0xff]
  %v28 = vld [vmem:[%s1 + $0x88] sm:$0xff]
  %v29 = vld [vmem:[%s1 + $0x90] sm:$0xff]
  %v30 = vld [vmem:[%s1 + $0x98] sm:$0xff]
  %v31 = vld [vmem:[%s1 + $0xa0] sm:$0xff]
  %v32 = vld [vmem:[%s1 + $0xa8] sm:$0xff]
  %v33 = vld [vmem:[%s1 + $0xb0] sm:$0xff]
  %v34 = vld [vmem:[%s1 + $0xb8] sm:$0xff]
  %v35 = vld [vmem:[%s1 + $0xc0] sm:$0xff]
  %v36 = vld [vmem:[%s1 + $0xc8] sm:$0xff]
  %v37 = vld [vmem:[%s1 + $0xd0] sm:$0xff]
  %v38 = vld [vmem:[%s1 + $0xd8] sm:$0xff]
  %v39 = vld [vmem:[%s1 + $0xe0] sm:$0xff]
  %v40 = vld [vmem:[%s1 + $0xe8] sm:$0xff]
  %v41 = vld [vmem:[%s1 + $0xf0] sm:$0xff]
  %v42 = vld [vmem:[%s1 + $0xf8] sm:$0xff]
  %v43 = vld [vmem:[%s1 + $0x100] sm:$0xff]
  %v44 = vld [vmem:[%s1 + $0x108] sm:$0xff]
  %v45 = vld [vmem:[%s1 + $0x110] sm:$0xff]
  %v46 = vld [vmem:[%s1 + $0x118] sm:$0xff]
  %v47 = vld [vmem:[%s1 + $0x120] sm:$0xff]
  %v48 = vld [vmem:[%s1 + $0x128] sm:$0xff]
  %v49 = vld [vmem:[%s1 + $0x130] sm:$0xff]
  %v50 = vld [vmem:[%s1 + $0x138] sm:$0xff]
  %v51 = vld [vmem:[%s1 + $0x140] sm:$0xff]
  %v52 = vld [vmem:[%s1 + $0x148] sm:$0xff]
  %v53 = vld [vmem:[%s1 + $0x150] sm:$0xff]
  %v54 = vld [vmem:[%s1 + $0x158] sm:$0xff]
  %v55 = vld [vmem:[%s1 + $0x160] sm:$0xff]
  %v56 = vld [vmem:[%s1 + $0x168] sm:$0xff]
  %v57 = vld [vmem:[%s1 + $0x170] sm:$0xff]
  %v58 = vld [vmem:[%s1 + $0x178] sm:$0xff]
  %v59 = vld [vmem:[%s1 + $0x180] sm:$0xff]
  %v60 = vld [vmem:[%s1 + $0x188] sm:$0xff]
  %v61 = vld [vmem:[%s1 + $0x190] sm:$0xff]
  %v62 = vld [vmem:[%s1 + $0x198] sm:$0xff]
  %v63 = vld [vmem:[%s1 + $0x1a0] sm:$0xff]
  %v64 = vld [vmem:[%s1 + $0x1a8] sm:$0xff]
  %v65 = vld [vmem:[%s1 + $0x1b0] sm:$0xff]
  %v66 = vld [vmem:[%s1 + $0x1b8] sm:$0xff]
  %v67 = vld [vmem:[%s1 + $0x1c0] sm:$0xff]
  %v68 = vld [vmem:[%s1 + $0x1c8] sm:$0xff]
  %v69 = vld [vmem:[%s1 + $0x1d0] sm:$0xff]
  %v70 = vld [vmem:[%s1 + $0x1d8] sm:$0xff]
  %v71 = vld [vmem:[%s1 + $0x1e0] sm:$0xff]
  %v72 = vld [vmem:[%s1 + $0x1e8] sm:$0xff]
  %v73 = vld [vmem:[%s1 + $0x1f0] sm:$0xff]
  %v74 = vld [vmem:[%s1 + $0x1f8] sm:$0xff]
  %v75 = vld [vmem:[%s1 + $0x200] sm:$0xff]
  %v76 = vld [vmem:[%s1 + $0x208] sm:$0xff]
  %v77 = vld [vmem:[%s1 + $0x210] sm:$0xff]
  %v78 = vld [vmem:[%s1 + $0x218] sm:$0xff]
  %v79 = vld [vmem:[%s1 + $0x220] sm:$0xff]
  %v80 = vld [vmem:[%s1 + $0x228] sm:$0xff]
  %v81 = vld [vmem:[%s1 + $0x230] sm:$0xff]
  %v82 = vld [vmem:[%s1 + $0x238] sm:$0xff]
  %v83 = vld [vmem:[%s1 + $0x240] sm:$0xff]
  %v84 = vld [vmem:[%s1 + $0x248] sm:$0xff]
  %v85 = vld [vmem:[%s1 + $0x250] sm:$0xff]
  %v86 = vld [vmem:[%s1 + $0x258] sm:$0xff]
  %v87 = vld [vmem:[%s1 + $0x260] sm:$0xff]
  %v88 = vld [vmem:[%s1 + $0x268] sm:$0xff]
  %v89 = vld [vmem:[%s1 + $0x270] sm:$0xff]
  %v90 = vld [vmem:[%s1 + $0x278] sm:$0xff]
  %v91 = vld [vmem:[%s1 + $0x280] sm:$0xff]
  %v92 = vld [vmem:[%s1 + $0x288] sm:$0xff]
  %v93 = vld [vmem:[%s1 + $0x290] sm:$0xff]
  %v94 = vld [vmem:[%s1 + $0x298] sm:$0xff]
  %v95 = vld [vmem:[%s1 + $0x2a0] sm:$0x1]
  %v96 = vld [vmem:[%s1 + $0x2a8] sm:$0x1]
  %v97 = vld [vmem:[%s1 + $0x2b0] sm:$0x1]
  %v98 = vld [vmem:[%s1 + $0x2b8] sm:$0x1]
  %v99 = vld [vmem:[%s1 + $0x2c0] sm:$0x1]
  %v100 = vld [vmem:[%s1 + $0x2c8] sm:$0x1]
  %v101 = vld [vmem:[%s1 + $0x2d0] sm:$0x1]
  %v102 = vld [vmem:[%s1 + $0x2d8] sm:$0x1]
  %v103 = vld [vmem:[%s1 + $0x2e0] sm:$0x1]
  %v104 = vld [vmem:[%s1 + $0x2e8] sm:$0x1]
  %v105 = vld [vmem:[%s1 + $0x2f0] sm:$0x1]
  %v106 = vld [vmem:[%s1 + $0x2f8] sm:$0x1]
  %v107 = vld [vmem:[%s1 + $0x300] sm:$0x1]
  %v108 = vld [vmem:[%s1 + $0x308] sm:$0x1]
  %v109 = vmax.f32 %v11, 0.0
  %v110 = vmax.f32 %v12, 0.0
  %v111 = vmax.f32 %v13, 0.0
  %v112 = vmax.f32 %v14, 0.0
  %v113 = vmax.f32 %v15, 0.0
  %v114 = vmax.f32 %v16, 0.0
  %v115 = vmax.f32 %v17, 0.0
  %v116 = vmax.f32 %v18, 0.0
  %v117 = vmax.f32 %v19, 0.0
  %v118 = vmax.f32 %v20, 0.0
  %v119 = vmax.f32 %v21, 0.0
  %v120 = vmax.f32 %v22, 0.0
  %v121 = vmax.f32 %v23, 0.0
  %v122 = vmax.f32 %v24, 0.0
  %v123 = vmax.f32 %v25, 0.0
  %v124 = vmax.f32 %v26, 0.0
  %v125 = vmax.f32 %v27, 0.0
  %v126 = vmax.f32 %v28, 0.0
  %v127 = vmax.f32 %v29, 0.0
  %v128 = vmax.f32 %v30, 0.0
  %v129 = vmax.f32 %v31, 0.0
  %v130 = vmax.f32 %v32, 0.0
  %v131 = vmax.f32 %v33, 0.0
  %v132 = vmax.f32 %v34, 0.0
  %v133 = vmax.f32 %v35, 0.0
  %v134 = vmax.f32 %v36, 0.0
  %v135 = vmax.f32 %v37, 0.0
  %v136 = vmax.f32 %v38, 0.0
  %v137 = vmax.f32 %v39, 0.0
  %v138 = vmax.f32 %v40, 0.0
  %v139 = vmax.f32 %v41, 0.0
  %v140 = vmax.f32 %v42, 0.0
  %v141 = vmax.f32 %v43, 0.0
  %v142 = vmax.f32 %v44, 0.0
  %v143 = vmax.f32 %v45, 0.0
  %v144 = vmax.f32 %v46, 0.0
  %v145 = vmax.f32 %v47, 0.0
  %v146 = vmax.f32 %v48, 0.0
  %v147 = vmax.f32 %v49, 0.0
  %v148 = vmax.f32 %v50, 0.0
  %v149 = vmax.f32 %v51, 0.0
  %v150 = vmax.f32 %v52, 0.0
  %v151 = vmax.f32 %v53, 0.0
  %v152 = vmax.f32 %v54, 0.0
  %v153 = vmax.f32 %v55, 0.0
  %v154 = vmax.f32 %v56, 0.0
  %v155 = vmax.f32 %v57, 0.0
  %v156 = vmax.f32 %v58, 0.0
  %v157 = vmax.f32 %v59, 0.0
  %v158 = vmax.f32 %v60, 0.0
  %v159 = vmax.f32 %v61, 0.0
  %v160 = vmax.f32 %v62, 0.0
  %v161 = vmax.f32 %v63, 0.0
  %v162 = vmax.f32 %v64, 0.0
  %v163 = vmax.f32 %v65, 0.0
  %v164 = vmax.f32 %v66, 0.0
  %v165 = vmax.f32 %v67, 0.0
  %v166 = vmax.f32 %v68, 0.0
  %v167 = vmax.f32 %v69, 0.0
  %v168 = vmax.f32 %v70, 0.0
  %v169 = vmax.f32 %v71, 0.0
  %v170 = vmax.f32 %v72, 0.0
  %v171 = vmax.f32 %v73, 0.0
  %v172 = vmax.f32 %v74, 0.0
  %v173 = vmax.f32 %v75, 0.0
  %v174 = vmax.f32 %v76, 0.0
  %v175 = vmax.f32 %v77, 0.0
  %v176 = vmax.f32 %v78, 0.0
  %v177 = vmax.f32 %v79, 0.0
  %v178 = vmax.f32 %v80, 0.0
  %v179 = vmax.f32 %v81, 0.0
  %v180 = vmax.f32 %v82, 0.0
  %v181 = vmax.f32 %v83, 0.0
  %v182 = vmax.f32 %v84, 0.0
  %v183 = vmax.f32 %v85, 0.0
  %v184 = vmax.f32 %v86, 0.0
  %v185 = vmax.f32 %v87, 0.0
  %v186 = vmax.f32 %v88, 0.0
  %v187 = vmax.f32 %v89, 0.0
  %v188 = vmax.f32 %v90, 0.0
  %v189 = vmax.f32 %v91, 0.0
  %v190 = vmax.f32 %v92, 0.0
  %v191 = vmax.f32 %v93, 0.0
  %v192 = vmax.f32 %v94, 0.0
  %v193 = vmax.f32 %v95, 0.0
  %v194 = vmax.f32 %v96, 0.0
  %v195 = vmax.f32 %v97, 0.0
  %v196 = vmax.f32 %v98, 0.0
  %v197 = vmax.f32 %v99, 0.0
  %v198 = vmax.f32 %v100, 0.0
  %v199 = vmax.f32 %v101, 0.0
  %v200 = vmax.f32 %v102, 0.0
  %v201 = vmax.f32 %v103, 0.0
  %v202 = vmax.f32 %v104, 0.0
  %v203 = vmax.f32 %v105, 0.0
  %v204 = vmax.f32 %v106, 0.0
  %v205 = vmax.f32 %v107, 0.0
  %v206 = vmax.f32 %v108, 0.0
  %v207 = vld [vmem:[%s0] sm:$0xf]
  %v208 = vld [vmem:[%s0 + $0x4] sm:$0xf]
  %v209 = vld [vmem:[%s0 + $0x8] sm:$0xf]
  %v210 = vld [vmem:[%s0 + $0xc] sm:$0xf]
  %v211 = vld [vmem:[%s0 + $0x10] sm:$0xf]
  %v212 = vld [vmem:[%s0 + $0x14] sm:$0xf]
  %v213 = vld [vmem:[%s0 + $0x18] sm:$0xf]
  %v214 = vld [vmem:[%s0 + $0x1c] sm:$0xf]
  %v215 = vld [vmem:[%s0 + $0x20] sm:$0xf]
  %v216 = vld [vmem:[%s0 + $0x24] sm:$0xf]
  %v217 = vld [vmem:[%s0 + $0x28] sm:$0xf]
  %v218 = vld [vmem:[%s0 + $0x2c] sm:$0xf]
  %v219 = vld [vmem:[%s0 + $0x30] sm:$0xf]
  %v220 = vld [vmem:[%s0 + $0x34] sm:$0xf]
  %v221 = vld [vmem:[%s0 + $0x38] sm:$0xf]
  %v222 = vld [vmem:[%s0 + $0x3c] sm:$0xf]
  %v223 = vld [vmem:[%s0 + $0x40] sm:$0xf]
  %v224 = vld [vmem:[%s0 + $0x44] sm:$0xf]
  %v225 = vld [vmem:[%s0 + $0x48] sm:$0xf]
  %v226 = vld [vmem:[%s0 + $0x4c] sm:$0xf]
  %v227 = vld [vmem:[%s0 + $0x50] sm:$0xf]
  %v228 = vld [vmem:[%s0 + $0x54] sm:$0xf]
  %v229 = vld [vmem:[%s0 + $0x58] sm:$0xf]
  %v230 = vld [vmem:[%s0 + $0x5c] sm:$0xf]
  %v231 = vld [vmem:[%s0 + $0x60] sm:$0xf]
  %v232 = vld [vmem:[%s0 + $0x64] sm:$0xf]
  %v233 = vld [vmem:[%s0 + $0x68] sm:$0xf]
  %v234 = vld [vmem:[%s0 + $0x6c] sm:$0xf]
  %v235 = vld [vmem:[%s0 + $0x70] sm:$0xf]
  %v236 = vld [vmem:[%s0 + $0x74] sm:$0xf]
  %v237 = vld [vmem:[%s0 + $0x78] sm:$0xf]
  %v238 = vld [vmem:[%s0 + $0x7c] sm:$0xf]
  %v239 = vld [vmem:[%s0 + $0x80] sm:$0xf]
  %v240 = vld [vmem:[%s0 + $0x84] sm:$0xf]
  %v241 = vld [vmem:[%s0 + $0x88] sm:$0xf]
  %v242 = vld [vmem:[%s0 + $0x8c] sm:$0xf]
  %v243 = vld [vmem:[%s0 + $0x90] sm:$0xf]
  %v244 = vld [vmem:[%s0 + $0x94] sm:$0xf]
  %v245 = vld [vmem:[%s0 + $0x98] sm:$0xf]
  %v246 = vld [vmem:[%s0 + $0x9c] sm:$0xf]
  %v247 = vld [vmem:[%s0 + $0xa0] sm:$0xf]
  %v248 = vld [vmem:[%s0 + $0xa4] sm:$0xf]
  %v249 = vld [vmem:[%s0 + $0xa8] sm:$0xf]
  %v250 = vld [vmem:[%s0 + $0xac] sm:$0xf]
  %v251 = vld [vmem:[%s0 + $0xb0] sm:$0xf]
  %v252 = vld [vmem:[%s0 + $0xb4] sm:$0xf]
  %v253 = vld [vmem:[%s0 + $0xb8] sm:$0xf]
  %v254 = vld [vmem:[%s0 + $0xbc] sm:$0xf]
  %v255 = vld [vmem:[%s0 + $0xc0] sm:$0xf]
  %v256 = vld [vmem:[%s0 + $0xc4] sm:$0xf]
  %v257 = vld [vmem:[%s0 + $0xc8] sm:$0xf]
  %v258 = vld [vmem:[%s0 + $0xcc] sm:$0xf]
  %v259 = vld [vmem:[%s0 + $0xd0] sm:$0xf]
  %v260 = vld [vmem:[%s0 + $0xd4] sm:$0xf]
  %v261 = vld [vmem:[%s0 + $0xd8] sm:$0xf]
  %v262 = vld [vmem:[%s0 + $0xdc] sm:$0xf]
  %v263 = vld [vmem:[%s0 + $0xe0] sm:$0xf]
  %v264 = vld [vmem:[%s0 + $0xe4] sm:$0xf]
  %v265 = vld [vmem:[%s0 + $0xe8] sm:$0xf]
  %v266 = vld [vmem:[%s0 + $0xec] sm:$0xf]
  %v267 = vld [vmem:[%s0 + $0xf0] sm:$0xf]
  %v268 = vld [vmem:[%s0 + $0xf4] sm:$0xf]
  %v269 = vld [vmem:[%s0 + $0xf8] sm:$0xf]
  %v270 = vld [vmem:[%s0 + $0xfc] sm:$0xf]
  %v271 = vld [vmem:[%s0 + $0x100] sm:$0xf]
  %v272 = vld [vmem:[%s0 + $0x104] sm:$0xf]
  %v273 = vld [vmem:[%s0 + $0x108] sm:$0xf]
  %v274 = vld [vmem:[%s0 + $0x10c] sm:$0xf]
  %v275 = vld [vmem:[%s0 + $0x110] sm:$0xf]
  %v276 = vld [vmem:[%s0 + $0x114] sm:$0xf]
  %v277 = vld [vmem:[%s0 + $0x118] sm:$0xf]
  %v278 = vld [vmem:[%s0 + $0x11c] sm:$0xf]
  %v279 = vld [vmem:[%s0 + $0x120] sm:$0xf]
  %v280 = vld [vmem:[%s0 + $0x124] sm:$0xf]
  %v281 = vld [vmem:[%s0 + $0x128] sm:$0xf]
  %v282 = vld [vmem:[%s0 + $0x12c] sm:$0xf]
  %v283 = vld [vmem:[%s0 + $0x130] sm:$0xf]
  %v284 = vld [vmem:[%s0 + $0x134] sm:$0xf]
  %v285 = vld [vmem:[%s0 + $0x138] sm:$0xf]
  %v286 = vld [vmem:[%s0 + $0x13c] sm:$0xf]
  %v287 = vld [vmem:[%s0 + $0x140] sm:$0xf]
  %v288 = vld [vmem:[%s0 + $0x144] sm:$0xf]
  %v289 = vld [vmem:[%s0 + $0x148] sm:$0xf]
  %v290 = vld [vmem:[%s0 + $0x14c] sm:$0xf]
  %v291 = vld [vmem:[%s0 + $0x150] sm:$0xf]
  %v292 = vld [vmem:[%s0 + $0x154] sm:$0xf]
  %v293 = vld [vmem:[%s0 + $0x158] sm:$0xf]
  %v294 = vld [vmem:[%s0 + $0x15c] sm:$0xf]
  %v295 = vld [vmem:[%s0 + $0x160] sm:$0xf]
  %v296 = vld [vmem:[%s0 + $0x164] sm:$0xf]
  %v297 = vld [vmem:[%s0 + $0x168] sm:$0xf]
  %v298 = vld [vmem:[%s0 + $0x16c] sm:$0xf]
  %v299 = vld [vmem:[%s0 + $0x170] sm:$0xf]
  %v300 = vld [vmem:[%s0 + $0x174] sm:$0xf]
  %v301 = vld [vmem:[%s0 + $0x178] sm:$0xf]
  %v302 = vld [vmem:[%s0 + $0x17c] sm:$0xf]
  %v303 = vld [vmem:[%s0 + $0x180] sm:$0xf]
  %v304 = vld [vmem:[%s0 + $0x184] sm:$0xf]
  %v305 = vld [vmem:[%s0 + $0x188] sm:$0xf]
  %v306 = vld [vmem:[%s0 + $0x18c] sm:$0xf]
  %v307 = vld [vmem:[%s0 + $0x190] sm:$0xf]
  %v308 = vld [vmem:[%s0 + $0x194] sm:$0xf]
  %v309 = vld [vmem:[%s0 + $0x198] sm:$0xf]
  %v310 = vld [vmem:[%s0 + $0x19c] sm:$0xf]
  %v311 = vld [vmem:[%s0 + $0x1a0] sm:$0xf]
  %v312 = vld [vmem:[%s0 + $0x1a4] sm:$0xf]
  %v313 = vld [vmem:[%s0 + $0x1a8] sm:$0xf]
  %v314 = vld [vmem:[%s0 + $0x1ac] sm:$0xf]
  %v315 = vld [vmem:[%s0 + $0x1b0] sm:$0xf]
  %v316 = vld [vmem:[%s0 + $0x1b4] sm:$0xf]
  %v317 = vld [vmem:[%s0 + $0x1b8] sm:$0xf]
  %v318 = vld [vmem:[%s0 + $0x1bc] sm:$0xf]
  %v319 = vld [vmem:[%s0 + $0x1c0] sm:$0xf]
  %v320 = vld [vmem:[%s0 + $0x1c4] sm:$0xf]
  %v321 = vld [vmem:[%s0 + $0x1c8] sm:$0xf]
  %v322 = vld [vmem:[%s0 + $0x1cc] sm:$0xf]
  %v323 = vld [vmem:[%s0 + $0x1d0] sm:$0xf]
  %v324 = vld [vmem:[%s0 + $0x1d4] sm:$0xf]
  %v325 = vld [vmem:[%s0 + $0x1d8] sm:$0xf]
  %v326 = vld [vmem:[%s0 + $0x1dc] sm:$0xf]
  %v327 = vld [vmem:[%s0 + $0x1e0] sm:$0xf]
  %v328 = vld [vmem:[%s0 + $0x1e4] sm:$0xf]
  %v329 = vld [vmem:[%s0 + $0x1e8] sm:$0xf]
  %v330 = vld [vmem:[%s0 + $0x1ec] sm:$0xf]
  %v331 = vld [vmem:[%s0 + $0x1f0] sm:$0xf]
  %v332 = vld [vmem:[%s0 + $0x1f4] sm:$0xf]
  %v333 = vld [vmem:[%s0 + $0x1f8] sm:$0xf]
  %v334 = vld [vmem:[%s0 + $0x1fc] sm:$0xf]
  %v335 = vld [vmem:[%s0 + $0x200] sm:$0xf]
  %v336 = vld [vmem:[%s0 + $0x204] sm:$0xf]
  %v337 = vld [vmem:[%s0 + $0x208] sm:$0xf]
  %v338 = vld [vmem:[%s0 + $0x20c] sm:$0xf]
  %v339 = vld [vmem:[%s0 + $0x210] sm:$0xf]
  %v340 = vld [vmem:[%s0 + $0x214] sm:$0xf]
  %v341 = vld [vmem:[%s0 + $0x218] sm:$0xf]
  %v342 = vld [vmem:[%s0 + $0x21c] sm:$0xf]
  %v343 = vld [vmem:[%s0 + $0x220] sm:$0xf]
  %v344 = vld [vmem:[%s0 + $0x224] sm:$0xf]
  %v345 = vld [vmem:[%s0 + $0x228] sm:$0xf]
  %v346 = vld [vmem:[%s0 + $0x22c] sm:$0xf]
  %v347 = vld [vmem:[%s0 + $0x230] sm:$0xf]
  %v348 = vld [vmem:[%s0 + $0x234] sm:$0xf]
  %v349 = vld [vmem:[%s0 + $0x238] sm:$0xf]
  %v350 = vld [vmem:[%s0 + $0x23c] sm:$0xf]
  %v351 = vld [vmem:[%s0 + $0x240] sm:$0xf]
  %v352 = vld [vmem:[%s0 + $0x244] sm:$0xf]
  %v353 = vld [vmem:[%s0 + $0x248] sm:$0xf]
  %v354 = vld [vmem:[%s0 + $0x24c] sm:$0xf]
  %v355 = vld [vmem:[%s0 + $0x250] sm:$0xf]
  %v356 = vld [vmem:[%s0 + $0x254] sm:$0xf]
  %v357 = vld [vmem:[%s0 + $0x258] sm:$0xf]
  %v358 = vld [vmem:[%s0 + $0x25c] sm:$0xf]
  %v359 = vld [vmem:[%s0 + $0x260] sm:$0xf]
  %v360 = vld [vmem:[%s0 + $0x264] sm:$0xf]
  %v361 = vld [vmem:[%s0 + $0x268] sm:$0xf]
  %v362 = vld [vmem:[%s0 + $0x26c] sm:$0xf]
  %v363 = vld [vmem:[%s0 + $0x270] sm:$0xf]
  %v364 = vld [vmem:[%s0 + $0x274] sm:$0xf]
  %v365 = vld [vmem:[%s0 + $0x278] sm:$0xf]
  %v366 = vld [vmem:[%s0 + $0x27c] sm:$0xf]
  %v367 = vld [vmem:[%s0 + $0x280] sm:$0xf]
  %v368 = vld [vmem:[%s0 + $0x284] sm:$0xf]
  %v369 = vld [vmem:[%s0 + $0x288] sm:$0xf]
  %v370 = vld [vmem:[%s0 + $0x28c] sm:$0xf]
  %v371 = vld [vmem:[%s0 + $0x290] sm:$0xf]
  %v372 = vld [vmem:[%s0 + $0x294] sm:$0xf]
  %v373 = vld [vmem:[%s0 + $0x298] sm:$0xf]
  %v374 = vld [vmem:[%s0 + $0x29c] sm:$0xf]
  %v375 = vld [vmem:[%s0 + $0x2a0] sm:$0xf]
  %v376 = vld [vmem:[%s0 + $0x2a4] sm:$0xf]
  %v377 = vld [vmem:[%s0 + $0x2a8] sm:$0xf]
  %v378 = vld [vmem:[%s0 + $0x2ac] sm:$0xf]
  %v379 = vld [vmem:[%s0 + $0x2b0] sm:$0xf]
  %v380 = vld [vmem:[%s0 + $0x2b4] sm:$0xf]
  %v381 = vld [vmem:[%s0 + $0x2b8] sm:$0xf]
  %v382 = vld [vmem:[%s0 + $0x2bc] sm:$0xf]
  %v383 = vld [vmem:[%s0 + $0x2c0] sm:$0xf]
  %v384 = vld [vmem:[%s0 + $0x2c4] sm:$0xf]
  %v385 = vld [vmem:[%s0 + $0x2c8] sm:$0xf]
  %v386 = vld [vmem:[%s0 + $0x2cc] sm:$0xf]
  %v387 = vld [vmem:[%s0 + $0x2d0] sm:$0xf]
  %v388 = vld [vmem:[%s0 + $0x2d4] sm:$0xf]
  %v389 = vld [vmem:[%s0 + $0x2d8] sm:$0xf]
  %v390 = vld [vmem:[%s0 + $0x2dc] sm:$0xf]
  %v391 = vld [vmem:[%s0 + $0x2e0] sm:$0xf]
  %v392 = vld [vmem:[%s0 + $0x2e4] sm:$0xf]
  %v393 = vld [vmem:[%s0 + $0x2e8] sm:$0xf]
  %v394 = vld [vmem:[%s0 + $0x2ec] sm:$0xf]
  %v395 = vld [vmem:[%s0 + $0x2f0] sm:$0xf]
  %v396 = vld [vmem:[%s0 + $0x2f4] sm:$0xf]
  %v397 = vld [vmem:[%s0 + $0x2f8] sm:$0xf]
  %v398 = vld [vmem:[%s0 + $0x2fc] sm:$0xf]
  %v399 = vld [vmem:[%s0 + $0x300] sm:$0xf]
  %v400 = vld [vmem:[%s0 + $0x304] sm:$0xf]
  %v401 = vld [vmem:[%s0 + $0x308] sm:$0xf]
  %v402 = vld [vmem:[%s0 + $0x30c] sm:$0xf]
  %v403 = vld [vmem:[%s0 + $0x310] sm:$0xf]
  %v404 = vld [vmem:[%s0 + $0x314] sm:$0xf]
  %v405 = vld [vmem:[%s0 + $0x318] sm:$0xf]
  %v406 = vld [vmem:[%s0 + $0x31c] sm:$0xf]
  %v407 = vld [vmem:[%s0 + $0x320] sm:$0xf]
  %v408 = vld [vmem:[%s0 + $0x324] sm:$0xf]
  %v409 = vld [vmem:[%s0 + $0x328] sm:$0xf]
  %v410 = vld [vmem:[%s0 + $0x32c] sm:$0xf]
  %v411 = vld [vmem:[%s0 + $0x330] sm:$0xf]
  %v412 = vld [vmem:[%s0 + $0x334] sm:$0xf]
  %v413 = vld [vmem:[%s0 + $0x338] sm:$0xf]
  %v414 = vld [vmem:[%s0 + $0x33c] sm:$0xf]
  %v415 = vld [vmem:[%s0 + $0x340] sm:$0xf]
  %v416 = vld [vmem:[%s0 + $0x344] sm:$0xf]
  %v417 = vld [vmem:[%s0 + $0x348] sm:$0xf]
  %v418 = vld [vmem:[%s0 + $0x34c] sm:$0xf]
  %v419 = vld [vmem:[%s0 + $0x350] sm:$0xf]
  %v420 = vld [vmem:[%s0 + $0x354] sm:$0xf]
  %v421 = vld [vmem:[%s0 + $0x358] sm:$0xf]
  %v422 = vld [vmem:[%s0 + $0x35c] sm:$0xf]
  %v423 = vld [vmem:[%s0 + $0x360] sm:$0xf]
  %v424 = vld [vmem:[%s0 + $0x364] sm:$0xf]
  %v425 = vld [vmem:[%s0 + $0x368] sm:$0xf]
  %v426 = vld [vmem:[%s0 + $0x36c] sm:$0xf]
  %v427 = vunpack.c.l.bf16 %v207
  %v428 = vunpack.c.l.bf16 %v208
  %v429 = vunpack.c.l.bf16 %v209
  %v430 = vunpack.c.l.bf16 %v210
  %v431 = vunpack.c.l.bf16 %v211
  %v432 = vunpack.c.l.bf16 %v212
  %v433 = vunpack.c.l.bf16 %v213
  %v434 = vunpack.c.l.bf16 %v214
  %v435 = vunpack.c.l.bf16 %v215
  %v436 = vunpack.c.l.bf16 %v216
  %v437 = vunpack.c.l.bf16 %v217
  %v438 = vunpack.c.l.bf16 %v218
  %v439 = vunpack.c.l.bf16 %v219
  %v440 = vunpack.c.l.bf16 %v220
  %v441 = vunpack.c.l.bf16 %v221
  %v442 = vunpack.c.l.bf16 %v222
  %v443 = vunpack.c.l.bf16 %v223
  %v444 = vunpack.c.l.bf16 %v224
  %v445 = vunpack.c.l.bf16 %v225
  %v446 = vunpack.c.l.bf16 %v226
  %v447 = vunpack.c.l.bf16 %v227
  %v448 = vunpack.c.l.bf16 %v228
  %v449 = vunpack.c.l.bf16 %v229
  %v450 = vunpack.c.l.bf16 %v230
  %v451 = vunpack.c.l.bf16 %v231
  %v452 = vunpack.c.l.bf16 %v232
  %v453 = vunpack.c.l.bf16 %v233
  %v454 = vunpack.c.l.bf16 %v234
  %v455 = vunpack.c.l.bf16 %v235
  %v456 = vunpack.c.l.bf16 %v236
  %v457 = vunpack.c.l.bf16 %v237
  %v458 = vunpack.c.l.bf16 %v238
  %v459 = vunpack.c.l.bf16 %v239
  %v460 = vunpack.c.l.bf16 %v240
  %v461 = vunpack.c.l.bf16 %v241
  %v462 = vunpack.c.l.bf16 %v242
  %v463 = vunpack.c.l.bf16 %v243
  %v464 = vunpack.c.l.bf16 %v244
  %v465 = vunpack.c.l.bf16 %v245
  %v466 = vunpack.c.l.bf16 %v246
  %v467 = vunpack.c.l.bf16 %v247
  %v468 = vunpack.c.l.bf16 %v248
  %v469 = vunpack.c.l.bf16 %v249
  %v470 = vunpack.c.l.bf16 %v250
  %v471 = vunpack.c.l.bf16 %v251
  %v472 = vunpack.c.l.bf16 %v252
  %v473 = vunpack.c.l.bf16 %v253
  %v474 = vunpack.c.l.bf16 %v254
  %v475 = vunpack.c.l.bf16 %v255
  %v476 = vunpack.c.l.bf16 %v256
  %v477 = vunpack.c.l.bf16 %v257
  %v478 = vunpack.c.l.bf16 %v258
  %v479 = vunpack.c.l.bf16 %v259
  %v480 = vunpack.c.l.bf16 %v260
  %v481 = vunpack.c.l.bf16 %v261
  %v482 = vunpack.c.l.bf16 %v262
  %v483 = vunpack.c.l.bf16 %v263
  %v484 = vunpack.c.l.bf16 %v264
  %v485 = vunpack.c.l.bf16 %v265
  %v486 = vunpack.c.l.bf16 %v266
  %v487 = vunpack.c.l.bf16 %v267
  %v488 = vunpack.c.l.bf16 %v268
  %v489 = vunpack.c.l.bf16 %v269
  %v490 = vunpack.c.l.bf16 %v270
  %v491 = vunpack.c.l.bf16 %v271
  %v492 = vunpack.c.l.bf16 %v272
  %v493 = vunpack.c.l.bf16 %v273
  %v494 = vunpack.c.l.bf16 %v274
  %v495 = vunpack.c.l.bf16 %v275
  %v496 = vunpack.c.l.bf16 %v276
  %v497 = vunpack.c.l.bf16 %v277
  %v498 = vunpack.c.l.bf16 %v278
  %v499 = vunpack.c.l.bf16 %v279
  %v500 = vunpack.c.l.bf16 %v280
  %v501 = vunpack.c.l.bf16 %v281
  %v502 = vunpack.c.l.bf16 %v282
  %v503 = vunpack.c.l.bf16 %v283
  %v504 = vunpack.c.l.bf16 %v284
  %v505 = vunpack.c.l.bf16 %v285
  %v506 = vunpack.c.l.bf16 %v286
  %v507 = vunpack.c.l.bf16 %v287
  %v508 = vunpack.c.l.bf16 %v288
  %v509 = vunpack.c.l.bf16 %v289
  %v510 = vunpack.c.l.bf16 %v290
  %v511 = vunpack.c.l.bf16 %v291
  %v512 = vunpack.c.l.bf16 %v292
  %v513 = vunpack.c.l.bf16 %v293
  %v514 = vunpack.c.l.bf16 %v294
  %v515 = vunpack.c.l.bf16 %v295
  %v516 = vunpack.c.l.bf16 %v296
  %v517 = vunpack.c.l.bf16 %v297
  %v518 = vunpack.c.l.bf16 %v298
  %v519 = vunpack.c.l.bf16 %v299
  %v520 = vunpack.c.l.bf16 %v300
  %v521 = vunpack.c.l.bf16 %v301
  %v522 = vunpack.c.l.bf16 %v302
  %v523 = vunpack.c.l.bf16 %v303
  %v524 = vunpack.c.l.bf16 %v304
  %v525 = vunpack.c.l.bf16 %v305
  %v526 = vunpack.c.l.bf16 %v306
  %v527 = vunpack.c.l.bf16 %v307
  %v528 = vunpack.c.l.bf16 %v308
  %v529 = vunpack.c.l.bf16 %v309
  %v530 = vunpack.c.l.bf16 %v310
  %v531 = vunpack.c.l.bf16 %v311
  %v532 = vunpack.c.l.bf16 %v312
  %v533 = vunpack.c.l.bf16 %v313
  %v534 = vunpack.c.l.bf16 %v314
  %v535 = vunpack.c.l.bf16 %v315
  %v536 = vunpack.c.l.bf16 %v316
  %v537 = vunpack.c.l.bf16 %v317
  %v538 = vunpack.c.l.bf16 %v318
  %v539 = vunpack.c.l.bf16 %v319
  %v540 = vunpack.c.l.bf16 %v320
  %v541 = vunpack.c.l.bf16 %v321
  %v542 = vunpack.c.l.bf16 %v322
  %v543 = vunpack.c.l.bf16 %v323
  %v544 = vunpack.c.l.bf16 %v324
  %v545 = vunpack.c.l.bf16 %v325
  %v546 = vunpack.c.l.bf16 %v326
  %v547 = vunpack.c.l.bf16 %v327
  %v548 = vunpack.c.l.bf16 %v328
  %v549 = vunpack.c.l.bf16 %v329
  %v550 = vunpack.c.l.bf16 %v330
  %v551 = vunpack.c.l.bf16 %v331
  %v552 = vunpack.c.l.bf16 %v332
  %v553 = vunpack.c.l.bf16 %v333
  %v554 = vunpack.c.l.bf16 %v334
  %v555 = vunpack.c.l.bf16 %v335
  %v556 = vunpack.c.l.bf16 %v336
  %v557 = vunpack.c.l.bf16 %v337
  %v558 = vunpack.c.l.bf16 %v338
  %v559 = vunpack.c.l.bf16 %v339
  %v560 = vunpack.c.l.bf16 %v340
  %v561 = vunpack.c.l.bf16 %v341
  %v562 = vunpack.c.l.bf16 %v342
  %v563 = vunpack.c.l.bf16 %v343
  %v564 = vunpack.c.l.bf16 %v344
  %v565 = vunpack.c.l.bf16 %v345
  %v566 = vunpack.c.l.bf16 %v346
  %v567 = vunpack.c.l.bf16 %v347
  %v568 = vunpack.c.l.bf16 %v348
  %v569 = vunpack.c.l.bf16 %v349
  %v570 = vunpack.c.l.bf16 %v350
  %v571 = vunpack.c.l.bf16 %v351
  %v572 = vunpack.c.l.bf16 %v352
  %v573 = vunpack.c.l.bf16 %v353
  %v574 = vunpack.c.l.bf16 %v354
  %v575 = vunpack.c.l.bf16 %v355
  %v576 = vunpack.c.l.bf16 %v356
  %v577 = vunpack.c.l.bf16 %v357
  %v578 = vunpack.c.l.bf16 %v358
  %v579 = vunpack.c.l.bf16 %v359
  %v580 = vunpack.c.l.bf16 %v360
  %v581 = vunpack.c.l.bf16 %v361
  %v582 = vunpack.c.l.bf16 %v362
  %v583 = vunpack.c.l.bf16 %v363
  %v584 = vunpack.c.l.bf16 %v364
  %v585 = vunpack.c.l.bf16 %v365
  %v586 = vunpack.c.l.bf16 %v366
  %v587 = vunpack.c.l.bf16 %v367
  %v588 = vunpack.c.l.bf16 %v368
  %v589 = vunpack.c.l.bf16 %v369
  %v590 = vunpack.c.l.bf16 %v370
  %v591 = vunpack.c.l.bf16 %v371
  %v592 = vunpack.c.l.bf16 %v372
  %v593 = vunpack.c.l.bf16 %v373
  %v594 = vunpack.c.l.bf16 %v374
  %v595 = vunpack.c.l.bf16 %v375
  %v596 = vunpack.c.l.bf16 %v376
  %v597 = vunpack.c.l.bf16 %v377
  %v598 = vunpack.c.l.bf16 %v378
  %v599 = vunpack.c.l.bf16 %v379
  %v600 = vunpack.c.l.bf16 %v380
  %v601 = vunpack.c.l.bf16 %v381
  %v602 = vunpack.c.l.bf16 %v382
  %v603 = vunpack.c.l.bf16 %v383
  %v604 = vunpack.c.l.bf16 %v384
  %v605 = vunpack.c.l.bf16 %v385
  %v606 = vunpack.c.l.bf16 %v386
  %v607 = vunpack.c.l.bf16 %v387
  %v608 = vunpack.c.l.bf16 %v388
  %v609 = vunpack.c.l.bf16 %v389
  %v610 = vunpack.c.l.bf16 %v390
  %v611 = vunpack.c.l.bf16 %v391
  %v612 = vunpack.c.l.bf16 %v392
  %v613 = vunpack.c.l.bf16 %v393
  %v614 = vunpack.c.l.bf16 %v394
  %v615 = vunpack.c.l.bf16 %v395
  %v616 = vunpack.c.l.bf16 %v396
  %v617 = vunpack.c.l.bf16 %v397
  %v618 = vunpack.c.l.bf16 %v398
  %v619 = vunpack.c.l.bf16 %v399
  %v620 = vunpack.c.l.bf16 %v400
  %v621 = vunpack.c.l.bf16 %v401
  %v622 = vunpack.c.l.bf16 %v402
  %v623 = vunpack.c.l.bf16 %v403
  %v624 = vunpack.c.l.bf16 %v404
  %v625 = vunpack.c.l.bf16 %v405
  %v626 = vunpack.c.l.bf16 %v406
  %v627 = vunpack.c.l.bf16 %v407
  %v628 = vunpack.c.l.bf16 %v408
  %v629 = vunpack.c.l.bf16 %v409
  %v630 = vunpack.c.l.bf16 %v410
  %v631 = vunpack.c.l.bf16 %v411
  %v632 = vunpack.c.l.bf16 %v412
  %v633 = vunpack.c.l.bf16 %v413
  %v634 = vunpack.c.l.bf16 %v414
  %v635 = vunpack.c.l.bf16 %v415
  %v636 = vunpack.c.l.bf16 %v416
  %v637 = vunpack.c.l.bf16 %v417
  %v638 = vunpack.c.l.bf16 %v418
  %v639 = vunpack.c.l.bf16 %v419
  %v640 = vunpack.c.l.bf16 %v420
  %v641 = vunpack.c.l.bf16 %v421
  %v642 = vunpack.c.l.bf16 %v422
  %v643 = vunpack.c.l.bf16 %v423
  %v644 = vunpack.c.l.bf16 %v424
  %v645 = vunpack.c.l.bf16 %v425
  %v646 = vunpack.c.l.bf16 %v426
  %vm647 = vcmask 785408
  %v649 = vsel %vm647, %v122, 0
  %v652 = vsel %vm647, %v136, 0
  %v655 = vsel %vm647, %v150, 0
  %v658 = vsel %vm647, %v164, 0
  %v661 = vsel %vm647, %v178, 0
  %v664 = vsel %vm647, %v192, 0
  %v667 = vsel %vm647, %v206, 0
  %669 = vmatpush.msra.mxu0 %v442
  %670 = vmatpush.msra.mxu0 %v441
  %671 = vmatpush.msra.mxu0 %v440
  %672 = vmatpush.msra.mxu0 %v439
  %673 = vmatpush.msra.mxu0 %v438
  %674 = vmatpush.msra.mxu0 %v437
  %675 = vmatpush.msra.mxu0 %v436
  %676 = vmatpush.msra.mxu0 %v435
  %677 = vmatpush.msra.mxu0 %v434
  %678 = vmatpush.msra.mxu0 %v433
  %679 = vmatpush.msra.mxu0 %v432
  %680 = vmatpush.msra.mxu0 %v431
  %681 = vmatpush.msra.mxu0 %v430
  %682 = vmatpush.msra.mxu0 %v429
  %683 = vmatpush.msra.mxu0 %v428
  %684 = vmatpush.msra.mxu0 %v427
  %685 = vmatmul.f32.gmra.mxu0 %v109
  %v686 = vpop.f32.mrf.mxu0
  %v687 = vadd.f32 0.0, %v686
  %688 = vmatmul.f32.gmra.mxu0 %v123
  %v689 = vpop.f32.mrf.mxu0
  %v690 = vadd.f32 0.0, %v689
  %691 = vmatmul.f32.gmra.mxu0 %v137
  %v692 = vpop.f32.mrf.mxu0
  %v693 = vadd.f32 0.0, %v692
  %694 = vmatmul.f32.gmra.mxu0 %v151
  %v695 = vpop.f32.mrf.mxu0
  %v696 = vadd.f32 0.0, %v695
  %697 = vmatmul.f32.gmra.mxu0 %v165
  %v698 = vpop.f32.mrf.mxu0
  %v699 = vadd.f32 0.0, %v698
  %700 = vmatmul.f32.gmra.mxu0 %v179
  %v701 = vpop.f32.mrf.mxu0
  %v702 = vadd.f32 0.0, %v701
  %703 = vmatmul.f32.gmra.mxu0 %v193
  %v704 = vpop.f32.mrf.mxu0
  %v705 = vadd.f32 0.0, %v704
  %706 = vdwg.mxu0
  %707 = vmatpush.msra.mxu0 %v458
  %708 = vmatpush.msra.mxu0 %v457
  %709 = vmatpush.msra.mxu0 %v456
  %710 = vmatpush.msra.mxu0 %v455
  %711 = vmatpush.msra.mxu0 %v454
  %712 = vmatpush.msra.mxu0 %v453
  %713 = vmatpush.msra.mxu0 %v452
  %714 = vmatpush.msra.mxu0 %v451
  %715 = vmatpush.msra.mxu0 %v450
  %716 = vmatpush.msra.mxu0 %v449
  %717 = vmatpush.msra.mxu0 %v448
  %718 = vmatpush.msra.mxu0 %v447
  %719 = vmatpush.msra.mxu0 %v446
  %720 = vmatpush.msra.mxu0 %v445
  %721 = vmatpush.msra.mxu0 %v444
  %722 = vmatpush.msra.mxu0 %v443
  %723 = vmatmul.f32.gmra.mxu0 %v110
  %v724 = vpop.f32.mrf.mxu0
  %v725 = vadd.f32 %v687, %v724
  %726 = vmatmul.f32.gmra.mxu0 %v124
  %v727 = vpop.f32.mrf.mxu0
  %v728 = vadd.f32 %v690, %v727
  %729 = vmatmul.f32.gmra.mxu0 %v138
  %v730 = vpop.f32.mrf.mxu0
  %v731 = vadd.f32 %v693, %v730
  %732 = vmatmul.f32.gmra.mxu0 %v152
  %v733 = vpop.f32.mrf.mxu0
  %v734 = vadd.f32 %v696, %v733
  %735 = vmatmul.f32.gmra.mxu0 %v166
  %v736 = vpop.f32.mrf.mxu0
  %v737 = vadd.f32 %v699, %v736
  %738 = vmatmul.f32.gmra.mxu0 %v180
  %v739 = vpop.f32.mrf.mxu0
  %v740 = vadd.f32 %v702, %v739
  %741 = vmatmul.f32.gmra.mxu0 %v194
  %v742 = vpop.f32.mrf.mxu0
  %v743 = vadd.f32 %v705, %v742
  %744 = vdwg.mxu0
  %745 = vmatpush.msra.mxu0 %v474
  %746 = vmatpush.msra.mxu0 %v473
  %747 = vmatpush.msra.mxu0 %v472
  %748 = vmatpush.msra.mxu0 %v471
  %749 = vmatpush.msra.mxu0 %v470
  %750 = vmatpush.msra.mxu0 %v469
  %751 = vmatpush.msra.mxu0 %v468
  %752 = vmatpush.msra.mxu0 %v467
  %753 = vmatpush.msra.mxu0 %v466
  %754 = vmatpush.msra.mxu0 %v465
  %755 = vmatpush.msra.mxu0 %v464
  %756 = vmatpush.msra.mxu0 %v463
  %757 = vmatpush.msra.mxu0 %v462
  %758 = vmatpush.msra.mxu0 %v461
  %759 = vmatpush.msra.mxu0 %v460
  %760 = vmatpush.msra.mxu0 %v459
  %761 = vmatmul.f32.gmra.mxu0 %v111
  %v762 = vpop.f32.mrf.mxu0
  %v763 = vadd.f32 %v725, %v762
  %764 = vmatmul.f32.gmra.mxu0 %v125
  %v765 = vpop.f32.mrf.mxu0
  %v766 = vadd.f32 %v728, %v765
  %767 = vmatmul.f32.gmra.mxu0 %v139
  %v768 = vpop.f32.mrf.mxu0
  %v769 = vadd.f32 %v731, %v768
  %770 = vmatmul.f32.gmra.mxu0 %v153
  %v771 = vpop.f32.mrf.mxu0
  %v772 = vadd.f32 %v734, %v771
  %773 = vmatmul.f32.gmra.mxu0 %v167
  %v774 = vpop.f32.mrf.mxu0
  %v775 = vadd.f32 %v737, %v774
  %776 = vmatmul.f32.gmra.mxu0 %v181
  %v777 = vpop.f32.mrf.mxu0
  %v778 = vadd.f32 %v740, %v777
  %779 = vmatmul.f32.gmra.mxu0 %v195
  %v780 = vpop.f32.mrf.mxu0
  %v781 = vadd.f32 %v743, %v780
  %782 = vdwg.mxu0
  %783 = vmatpush.msra.mxu0 %v490
  %784 = vmatpush.msra.mxu0 %v489
  %785 = vmatpush.msra.mxu0 %v488
  %786 = vmatpush.msra.mxu0 %v487
  %787 = vmatpush.msra.mxu0 %v486
  %788 = vmatpush.msra.mxu0 %v485
  %789 = vmatpush.msra.mxu0 %v484
  %790 = vmatpush.msra.mxu0 %v483
  %791 = vmatpush.msra.mxu0 %v482
  %792 = vmatpush.msra.mxu0 %v481
  %793 = vmatpush.msra.mxu0 %v480
  %794 = vmatpush.msra.mxu0 %v479
  %795 = vmatpush.msra.mxu0 %v478
  %796 = vmatpush.msra.mxu0 %v477
  %797 = vmatpush.msra.mxu0 %v476
  %798 = vmatpush.msra.mxu0 %v475
  %799 = vmatmul.f32.gmra.mxu0 %v112
  %v800 = vpop.f32.mrf.mxu0
  %v801 = vadd.f32 %v763, %v800
  %802 = vmatmul.f32.gmra.mxu0 %v126
  %v803 = vpop.f32.mrf.mxu0
  %v804 = vadd.f32 %v766, %v803
  %805 = vmatmul.f32.gmra.mxu0 %v140
  %v806 = vpop.f32.mrf.mxu0
  %v807 = vadd.f32 %v769, %v806
  %808 = vmatmul.f32.gmra.mxu0 %v154
  %v809 = vpop.f32.mrf.mxu0
  %v810 = vadd.f32 %v772, %v809
  %811 = vmatmul.f32.gmra.mxu0 %v168
  %v812 = vpop.f32.mrf.mxu0
  %v813 = vadd.f32 %v775, %v812
  %814 = vmatmul.f32.gmra.mxu0 %v182
  %v815 = vpop.f32.mrf.mxu0
  %v816 = vadd.f32 %v778, %v815
  %817 = vmatmul.f32.gmra.mxu0 %v196
  %v818 = vpop.f32.mrf.mxu0
  %v819 = vadd.f32 %v781, %v818
  %820 = vdwg.mxu0
  %821 = vmatpush.msra.mxu0 %v506
  %822 = vmatpush.msra.mxu0 %v505
  %823 = vmatpush.msra.mxu0 %v504
  %824 = vmatpush.msra.mxu0 %v503
  %825 = vmatpush.msra.mxu0 %v502
  %826 = vmatpush.msra.mxu0 %v501
  %827 = vmatpush.msra.mxu0 %v500
  %828 = vmatpush.msra.mxu0 %v499
  %829 = vmatpush.msra.mxu0 %v498
  %830 = vmatpush.msra.mxu0 %v497
  %831 = vmatpush.msra.mxu0 %v496
  %832 = vmatpush.msra.mxu0 %v495
  %833 = vmatpush.msra.mxu0 %v494
  %834 = vmatpush.msra.mxu0 %v493
  %835 = vmatpush.msra.mxu0 %v492
  %836 = vmatpush.msra.mxu0 %v491
  %837 = vmatmul.f32.gmra.mxu0 %v113
  %v838 = vpop.f32.mrf.mxu0
  %v839 = vadd.f32 %v801, %v838
  %840 = vmatmul.f32.gmra.mxu0 %v127
  %v841 = vpop.f32.mrf.mxu0
  %v842 = vadd.f32 %v804, %v841
  %843 = vmatmul.f32.gmra.mxu0 %v141
  %v844 = vpop.f32.mrf.mxu0
  %v845 = vadd.f32 %v807, %v844
  %846 = vmatmul.f32.gmra.mxu0 %v155
  %v847 = vpop.f32.mrf.mxu0
  %v848 = vadd.f32 %v810, %v847
  %849 = vmatmul.f32.gmra.mxu0 %v169
  %v850 = vpop.f32.mrf.mxu0
  %v851 = vadd.f32 %v813, %v850
  %852 = vmatmul.f32.gmra.mxu0 %v183
  %v853 = vpop.f32.mrf.mxu0
  %v854 = vadd.f32 %v816, %v853
  %855 = vmatmul.f32.gmra.mxu0 %v197
  %v856 = vpop.f32.mrf.mxu0
  %v857 = vadd.f32 %v819, %v856
  %858 = vdwg.mxu0
  %859 = vmatpush.msra.mxu0 %v522
  %860 = vmatpush.msra.mxu0 %v521
  %861 = vmatpush.msra.mxu0 %v520
  %862 = vmatpush.msra.mxu0 %v519
  %863 = vmatpush.msra.mxu0 %v518
  %864 = vmatpush.msra.mxu0 %v517
  %865 = vmatpush.msra.mxu0 %v516
  %866 = vmatpush.msra.mxu0 %v515
  %867 = vmatpush.msra.mxu0 %v514
  %868 = vmatpush.msra.mxu0 %v513
  %869 = vmatpush.msra.mxu0 %v512
  %870 = vmatpush.msra.mxu0 %v511
  %871 = vmatpush.msra.mxu0 %v510
  %872 = vmatpush.msra.mxu0 %v509
  %873 = vmatpush.msra.mxu0 %v508
  %874 = vmatpush.msra.mxu0 %v507
  %875 = vmatmul.f32.gmra.mxu0 %v114
  %v876 = vpop.f32.mrf.mxu0
  %v877 = vadd.f32 %v839, %v876
  %878 = vmatmul.f32.gmra.mxu0 %v128
  %v879 = vpop.f32.mrf.mxu0
  %v880 = vadd.f32 %v842, %v879
  %881 = vmatmul.f32.gmra.mxu0 %v142
  %v882 = vpop.f32.mrf.mxu0
  %v883 = vadd.f32 %v845, %v882
  %884 = vmatmul.f32.gmra.mxu0 %v156
  %v885 = vpop.f32.mrf.mxu0
  %v886 = vadd.f32 %v848, %v885
  %887 = vmatmul.f32.gmra.mxu0 %v170
  %v888 = vpop.f32.mrf.mxu0
  %v889 = vadd.f32 %v851, %v888
  %890 = vmatmul.f32.gmra.mxu0 %v184
  %v891 = vpop.f32.mrf.mxu0
  %v892 = vadd.f32 %v854, %v891
  %893 = vmatmul.f32.gmra.mxu0 %v198
  %v894 = vpop.f32.mrf.mxu0
  %v895 = vadd.f32 %v857, %v894
  %896 = vdwg.mxu0
  %897 = vmatpush.msra.mxu0 %v538
  %898 = vmatpush.msra.mxu0 %v537
  %899 = vmatpush.msra.mxu0 %v536
  %900 = vmatpush.msra.mxu0 %v535
  %901 = vmatpush.msra.mxu0 %v534
  %902 = vmatpush.msra.mxu0 %v533
  %903 = vmatpush.msra.mxu0 %v532
  %904 = vmatpush.msra.mxu0 %v531
  %905 = vmatpush.msra.mxu0 %v530
  %906 = vmatpush.msra.mxu0 %v529
  %907 = vmatpush.msra.mxu0 %v528
  %908 = vmatpush.msra.mxu0 %v527
  %909 = vmatpush.msra.mxu0 %v526
  %910 = vmatpush.msra.mxu0 %v525
  %911 = vmatpush.msra.mxu0 %v524
  %912 = vmatpush.msra.mxu0 %v523
  %913 = vmatmul.f32.gmra.mxu0 %v115
  %v914 = vpop.f32.mrf.mxu0
  %v915 = vadd.f32 %v877, %v914
  %916 = vmatmul.f32.gmra.mxu0 %v129
  %v917 = vpop.f32.mrf.mxu0
  %v918 = vadd.f32 %v880, %v917
  %919 = vmatmul.f32.gmra.mxu0 %v143
  %v920 = vpop.f32.mrf.mxu0
  %v921 = vadd.f32 %v883, %v920
  %922 = vmatmul.f32.gmra.mxu0 %v157
  %v923 = vpop.f32.mrf.mxu0
  %v924 = vadd.f32 %v886, %v923
  %925 = vmatmul.f32.gmra.mxu0 %v171
  %v926 = vpop.f32.mrf.mxu0
  %v927 = vadd.f32 %v889, %v926
  %928 = vmatmul.f32.gmra.mxu0 %v185
  %v929 = vpop.f32.mrf.mxu0
  %v930 = vadd.f32 %v892, %v929
  %931 = vmatmul.f32.gmra.mxu0 %v199
  %v932 = vpop.f32.mrf.mxu0
  %v933 = vadd.f32 %v895, %v932
  %934 = vdwg.mxu0
  %935 = vmatpush.msra.mxu0 %v554
  %936 = vmatpush.msra.mxu0 %v553
  %937 = vmatpush.msra.mxu0 %v552
  %938 = vmatpush.msra.mxu0 %v551
  %939 = vmatpush.msra.mxu0 %v550
  %940 = vmatpush.msra.mxu0 %v549
  %941 = vmatpush.msra.mxu0 %v548
  %942 = vmatpush.msra.mxu0 %v547
  %943 = vmatpush.msra.mxu0 %v546
  %944 = vmatpush.msra.mxu0 %v545
  %945 = vmatpush.msra.mxu0 %v544
  %946 = vmatpush.msra.mxu0 %v543
  %947 = vmatpush.msra.mxu0 %v542
  %948 = vmatpush.msra.mxu0 %v541
  %949 = vmatpush.msra.mxu0 %v540
  %950 = vmatpush.msra.mxu0 %v539
  %951 = vmatmul.f32.gmra.mxu0 %v116
  %v952 = vpop.f32.mrf.mxu0
  %v953 = vadd.f32 %v915, %v952
  %954 = vmatmul.f32.gmra.mxu0 %v130
  %v955 = vpop.f32.mrf.mxu0
  %v956 = vadd.f32 %v918, %v955
  %957 = vmatmul.f32.gmra.mxu0 %v144
  %v958 = vpop.f32.mrf.mxu0
  %v959 = vadd.f32 %v921, %v958
  %960 = vmatmul.f32.gmra.mxu0 %v158
  %v961 = vpop.f32.mrf.mxu0
  %v962 = vadd.f32 %v924, %v961
  %963 = vmatmul.f32.gmra.mxu0 %v172
  %v964 = vpop.f32.mrf.mxu0
  %v965 = vadd.f32 %v927, %v964
  %966 = vmatmul.f32.gmra.mxu0 %v186
  %v967 = vpop.f32.mrf.mxu0
  %v968 = vadd.f32 %v930, %v967
  %969 = vmatmul.f32.gmra.mxu0 %v200
  %v970 = vpop.f32.mrf.mxu0
  %v971 = vadd.f32 %v933, %v970
  %972 = vdwg.mxu0
  %973 = vmatpush.msra.mxu0 %v570
  %974 = vmatpush.msra.mxu0 %v569
  %975 = vmatpush.msra.mxu0 %v568
  %976 = vmatpush.msra.mxu0 %v567
  %977 = vmatpush.msra.mxu0 %v566
  %978 = vmatpush.msra.mxu0 %v565
  %979 = vmatpush.msra.mxu0 %v564
  %980 = vmatpush.msra.mxu0 %v563
  %981 = vmatpush.msra.mxu0 %v562
  %982 = vmatpush.msra.mxu0 %v561
  %983 = vmatpush.msra.mxu0 %v560
  %984 = vmatpush.msra.mxu0 %v559
  %985 = vmatpush.msra.mxu0 %v558
  %986 = vmatpush.msra.mxu0 %v557
  %987 = vmatpush.msra.mxu0 %v556
  %988 = vmatpush.msra.mxu0 %v555
  %989 = vmatmul.f32.gmra.mxu0 %v117
  %v990 = vpop.f32.mrf.mxu0
  %v991 = vadd.f32 %v953, %v990
  %992 = vmatmul.f32.gmra.mxu0 %v131
  %v993 = vpop.f32.mrf.mxu0
  %v994 = vadd.f32 %v956, %v993
  %995 = vmatmul.f32.gmra.mxu0 %v145
  %v996 = vpop.f32.mrf.mxu0
  %v997 = vadd.f32 %v959, %v996
  %998 = vmatmul.f32.gmra.mxu0 %v159
  %v999 = vpop.f32.mrf.mxu0
  %v1000 = vadd.f32 %v962, %v999
  %1001 = vmatmul.f32.gmra.mxu0 %v173
  %v1002 = vpop.f32.mrf.mxu0
  %v1003 = vadd.f32 %v965, %v1002
  %1004 = vmatmul.f32.gmra.mxu0 %v187
  %v1005 = vpop.f32.mrf.mxu0
  %v1006 = vadd.f32 %v968, %v1005
  %1007 = vmatmul.f32.gmra.mxu0 %v201
  %v1008 = vpop.f32.mrf.mxu0
  %v1009 = vadd.f32 %v971, %v1008
  %1010 = vdwg.mxu0
  %1011 = vmatpush.msra.mxu0 %v586
  %1012 = vmatpush.msra.mxu0 %v585
  %1013 = vmatpush.msra.mxu0 %v584
  %1014 = vmatpush.msra.mxu0 %v583
  %1015 = vmatpush.msra.mxu0 %v582
  %1016 = vmatpush.msra.mxu0 %v581
  %1017 = vmatpush.msra.mxu0 %v580
  %1018 = vmatpush.msra.mxu0 %v579
  %1019 = vmatpush.msra.mxu0 %v578
  %1020 = vmatpush.msra.mxu0 %v577
  %1021 = vmatpush.msra.mxu0 %v576
  %1022 = vmatpush.msra.mxu0 %v575
  %1023 = vmatpush.msra.mxu0 %v574
  %1024 = vmatpush.msra.mxu0 %v573
  %1025 = vmatpush.msra.mxu0 %v572
  %1026 = vmatpush.msra.mxu0 %v571
  %1027 = vmatmul.f32.gmra.mxu0 %v118
  %v1028 = vpop.f32.mrf.mxu0
  %v1029 = vadd.f32 %v991, %v1028
  %1030 = vmatmul.f32.gmra.mxu0 %v132
  %v1031 = vpop.f32.mrf.mxu0
  %v1032 = vadd.f32 %v994, %v1031
  %1033 = vmatmul.f32.gmra.mxu0 %v146
  %v1034 = vpop.f32.mrf.mxu0
  %v1035 = vadd.f32 %v997, %v1034
  %1036 = vmatmul.f32.gmra.mxu0 %v160
  %v1037 = vpop.f32.mrf.mxu0
  %v1038 = vadd.f32 %v1000, %v1037
  %1039 = vmatmul.f32.gmra.mxu0 %v174
  %v1040 = vpop.f32.mrf.mxu0
  %v1041 = vadd.f32 %v1003, %v1040
  %1042 = vmatmul.f32.gmra.mxu0 %v188
  %v1043 = vpop.f32.mrf.mxu0
  %v1044 = vadd.f32 %v1006, %v1043
  %1045 = vmatmul.f32.gmra.mxu0 %v202
  %v1046 = vpop.f32.mrf.mxu0
  %v1047 = vadd.f32 %v1009, %v1046
  %1048 = vdwg.mxu0
  %1049 = vmatpush.msra.mxu0 %v602
  %1050 = vmatpush.msra.mxu0 %v601
  %1051 = vmatpush.msra.mxu0 %v600
  %1052 = vmatpush.msra.mxu0 %v599
  %1053 = vmatpush.msra.mxu0 %v598
  %1054 = vmatpush.msra.mxu0 %v597
  %1055 = vmatpush.msra.mxu0 %v596
  %1056 = vmatpush.msra.mxu0 %v595
  %1057 = vmatpush.msra.mxu0 %v594
  %1058 = vmatpush.msra.mxu0 %v593
  %1059 = vmatpush.msra.mxu0 %v592
  %1060 = vmatpush.msra.mxu0 %v591
  %1061 = vmatpush.msra.mxu0 %v590
  %1062 = vmatpush.msra.mxu0 %v589
  %1063 = vmatpush.msra.mxu0 %v588
  %1064 = vmatpush.msra.mxu0 %v587
  %1065 = vmatmul.f32.gmra.mxu0 %v119
  %v1066 = vpop.f32.mrf.mxu0
  %v1067 = vadd.f32 %v1029, %v1066
  %1068 = vmatmul.f32.gmra.mxu0 %v133
  %v1069 = vpop.f32.mrf.mxu0
  %v1070 = vadd.f32 %v1032, %v1069
  %1071 = vmatmul.f32.gmra.mxu0 %v147
  %v1072 = vpop.f32.mrf.mxu0
  %v1073 = vadd.f32 %v1035, %v1072
  %1074 = vmatmul.f32.gmra.mxu0 %v161
  %v1075 = vpop.f32.mrf.mxu0
  %v1076 = vadd.f32 %v1038, %v1075
  %1077 = vmatmul.f32.gmra.mxu0 %v175
  %v1078 = vpop.f32.mrf.mxu0
  %v1079 = vadd.f32 %v1041, %v1078
  %1080 = vmatmul.f32.gmra.mxu0 %v189
  %v1081 = vpop.f32.mrf.mxu0
  %v1082 = vadd.f32 %v1044, %v1081
  %1083 = vmatmul.f32.gmra.mxu0 %v203
  %v1084 = vpop.f32.mrf.mxu0
  %v1085 = vadd.f32 %v1047, %v1084
  %1086 = vdwg.mxu0
  %1087 = vmatpush.msra.mxu0 %v618
  %1088 = vmatpush.msra.mxu0 %v617
  %1089 = vmatpush.msra.mxu0 %v616
  %1090 = vmatpush.msra.mxu0 %v615
  %1091 = vmatpush.msra.mxu0 %v614
  %1092 = vmatpush.msra.mxu0 %v613
  %1093 = vmatpush.msra.mxu0 %v612
  %1094 = vmatpush.msra.mxu0 %v611
  %1095 = vmatpush.msra.mxu0 %v610
  %1096 = vmatpush.msra.mxu0 %v609
  %1097 = vmatpush.msra.mxu0 %v608
  %1098 = vmatpush.msra.mxu0 %v607
  %1099 = vmatpush.msra.mxu0 %v606
  %1100 = vmatpush.msra.mxu0 %v605
  %1101 = vmatpush.msra.mxu0 %v604
  %1102 = vmatpush.msra.mxu0 %v603
  %1103 = vmatmul.f32.gmra.mxu0 %v120
  %v1104 = vpop.f32.mrf.mxu0
  %v1105 = vadd.f32 %v1067, %v1104
  %1106 = vmatmul.f32.gmra.mxu0 %v134
  %v1107 = vpop.f32.mrf.mxu0
  %v1108 = vadd.f32 %v1070, %v1107
  %1109 = vmatmul.f32.gmra.mxu0 %v148
  %v1110 = vpop.f32.mrf.mxu0
  %v1111 = vadd.f32 %v1073, %v1110
  %1112 = vmatmul.f32.gmra.mxu0 %v162
  %v1113 = vpop.f32.mrf.mxu0
  %v1114 = vadd.f32 %v1076, %v1113
  %1115 = vmatmul.f32.gmra.mxu0 %v176
  %v1116 = vpop.f32.mrf.mxu0
  %v1117 = vadd.f32 %v1079, %v1116
  %1118 = vmatmul.f32.gmra.mxu0 %v190
  %v1119 = vpop.f32.mrf.mxu0
  %v1120 = vadd.f32 %v1082, %v1119
  %1121 = vmatmul.f32.gmra.mxu0 %v204
  %v1122 = vpop.f32.mrf.mxu0
  %v1123 = vadd.f32 %v1085, %v1122
  %1124 = vdwg.mxu0
  %1125 = vmatpush.msra.mxu0 %v634
  %1126 = vmatpush.msra.mxu0 %v633
  %1127 = vmatpush.msra.mxu0 %v632
  %1128 = vmatpush.msra.mxu0 %v631
  %1129 = vmatpush.msra.mxu0 %v630
  %1130 = vmatpush.msra.mxu0 %v629
  %1131 = vmatpush.msra.mxu0 %v628
  %1132 = vmatpush.msra.mxu0 %v627
  %1133 = vmatpush.msra.mxu0 %v626
  %1134 = vmatpush.msra.mxu0 %v625
  %1135 = vmatpush.msra.mxu0 %v624
  %1136 = vmatpush.msra.mxu0 %v623
  %1137 = vmatpush.msra.mxu0 %v622
  %1138 = vmatpush.msra.mxu0 %v621
  %1139 = vmatpush.msra.mxu0 %v620
  %1140 = vmatpush.msra.mxu0 %v619
  %1141 = vmatmul.f32.gmra.mxu0 %v121
  %v1142 = vpop.f32.mrf.mxu0
  %v1143 = vadd.f32 %v1105, %v1142
  %1144 = vmatmul.f32.gmra.mxu0 %v135
  %v1145 = vpop.f32.mrf.mxu0
  %v1146 = vadd.f32 %v1108, %v1145
  %1147 = vmatmul.f32.gmra.mxu0 %v149
  %v1148 = vpop.f32.mrf.mxu0
  %v1149 = vadd.f32 %v1111, %v1148
  %1150 = vmatmul.f32.gmra.mxu0 %v163
  %v1151 = vpop.f32.mrf.mxu0
  %v1152 = vadd.f32 %v1114, %v1151
  %1153 = vmatmul.f32.gmra.mxu0 %v177
  %v1154 = vpop.f32.mrf.mxu0
  %v1155 = vadd.f32 %v1117, %v1154
  %1156 = vmatmul.f32.gmra.mxu0 %v191
  %v1157 = vpop.f32.mrf.mxu0
  %v1158 = vadd.f32 %v1120, %v1157
  %1159 = vmatmul.f32.gmra.mxu0 %v205
  %v1160 = vpop.f32.mrf.mxu0
  %v1161 = vadd.f32 %v1123, %v1160
  %1162 = vdwg.mxu0
  %1163 = vmatpush.msra.mxu0 0.0
  %1164 = vmatpush.msra.mxu0 0.0
  %1165 = vmatpush.msra.mxu0 0.0
  %1166 = vmatpush.msra.mxu0 0.0
  %1167 = vmatpush.msra.mxu0 %v646
  %1168 = vmatpush.msra.mxu0 %v645
  %1169 = vmatpush.msra.mxu0 %v644
  %1170 = vmatpush.msra.mxu0 %v643
  %1171 = vmatpush.msra.mxu0 %v642
  %1172 = vmatpush.msra.mxu0 %v641
  %1173 = vmatpush.msra.mxu0 %v640
  %1174 = vmatpush.msra.mxu0 %v639
  %1175 = vmatpush.msra.mxu0 %v638
  %1176 = vmatpush.msra.mxu0 %v637
  %1177 = vmatpush.msra.mxu0 %v636
  %1178 = vmatpush.msra.mxu0 %v635
  %1179 = vmatmul.f32.gmra.mxu0 %v649
  %v1180 = vpop.f32.mrf.mxu0
  %v1181 = vadd.f32 %v1143, %v1180
  %1182 = vmatmul.f32.gmra.mxu0 %v652
  %v1183 = vpop.f32.mrf.mxu0
  %v1184 = vadd.f32 %v1146, %v1183
  %1185 = vmatmul.f32.gmra.mxu0 %v655
  %v1186 = vpop.f32.mrf.mxu0
  %v1187 = vadd.f32 %v1149, %v1186
  %1188 = vmatmul.f32.gmra.mxu0 %v658
  %v1189 = vpop.f32.mrf.mxu0
  %v1190 = vadd.f32 %v1152, %v1189
  %1191 = vmatmul.f32.gmra.mxu0 %v661
  %v1192 = vpop.f32.mrf.mxu0
  %v1193 = vadd.f32 %v1155, %v1192
  %1194 = vmatmul.f32.gmra.mxu0 %v664
  %v1195 = vpop.f32.mrf.mxu0
  %v1196 = vadd.f32 %v1158, %v1195
  %1197 = vmatmul.f32.gmra.mxu0 %v667
  %v1198 = vpop.f32.mrf.mxu0
  %v1199 = vadd.f32 %v1161, %v1198
  %1200 = vdwg.mxu0
  %1201 = vst [vmem:[%s2] sm:$0xff] %v1181
  %1202 = vst [vmem:[%s2 + $0x8] sm:$0xff] %v1184
  %1203 = vst [vmem:[%s2 + $0x10] sm:$0xff] %v1187
  %1204 = vst [vmem:[%s2 + $0x18] sm:$0xff] %v1190
  %1205 = vst [vmem:[%s2 + $0x20] sm:$0xff] %v1193
  %1206 = vst [vmem:[%s2 + $0x28] sm:$0xff] %v1196
  %1207 = vst [vmem:[%s2 + $0x30] sm:$0x1] %v1199
  // Predicated region
  $region10: #{tpu_custom_call.1} parent=0 // pred_check
    _
  $region11: #{tpu_custom_call.1} parent=0 // pred_check_branch
    %1209 = sbr.rel (0) target = $region13
  $region12: #{tpu_custom_call.1} parent=0 // pred_region
    _
  $region13: #{tpu_custom_call.1} parent=0 // pred_fallthru
    _
  // Predicated region
  $region14: #{tpu_custom_call.1} parent=0 // pred_check
    _
  $region15: #{tpu_custom_call.1} parent=0 // pred_check_branch
    %1211 = sbr.rel (0) target = $region17
  $region16: #{tpu_custom_call.1} parent=0 // pred_region
    _
  $region17: #{tpu_custom_call.1} parent=0 // pred_fallthru
    _

</llo_original>
